<compile_context>
chip_gen: v6e
topology: v6e:2x2x1
jax: 0.10.0
libtpu: 0.0.40
codegen_flags: <defaults>
</compile_context>

<pallas_src>
import jax
import jax.numpy as jnp
from jax.experimental import pallas as pl
from jax.experimental.pallas import tpu as pltpu


# --------------------------- fused Haar factors -----------------------------
def _haar_pool_matrix(n):
    """(n//2, n) 0/1 matrix with ones at [i, 2i] and [i, 2i+1] (Haar low-pass)."""
    r = jnp.arange(n // 2, dtype=jnp.int32)[:, None]
    c = jnp.arange(n, dtype=jnp.int32)[None, :]
    return ((c == 2 * r) | (c == 2 * r + 1)).astype(jnp.float32)


def _fused_row_map(n, n_up):
    """(n//8 * 2**n_up, n) 0/1 matrix: 3 Haar LL pooling levels fused with
    n_up zero-detail inverse levels (row duplication).  Normalization (the
    0.5 per level) is folded in by the caller."""
    m = _haar_pool_matrix(n)                    # n   -> n/2
    m = _haar_pool_matrix(n // 2) @ m           # n/2 -> n/4
    m = _haar_pool_matrix(n // 4) @ m           # n/4 -> n/8
    size = n // 8
    for _ in range(n_up):
        m = _haar_pool_matrix(2 * size).T @ m   # IDWT (zero details) = row repeat
        size *= 2
    return m


# --------------------------------- kernel -----------------------------------
def _wavelet_kernel(x_ref, lb_ref, r_ref, o_ref):
    tc, h, w = x_ref.shape
    wo = r_ref.shape[1]
    x = x_ref[...]                                        # (TC, H, W), input dtype
    # Lane (W) direction: one flat MXU matmul; fused pooling/upsampling and all
    # 0.5 normalizations live inside R.  Accumulate in f32.
    t = jnp.dot(x.reshape(tc * h, w), r_ref[...],
                preferred_element_type=jnp.float32)       # (TC*H, Wo) f32
    t = t.reshape(tc, h, wo)
    # Sublane (H) direction: small batched matmul against the resident L map.
    out = jnp.einsum("bph,bhw->bpw", lb_ref[...], t,
                     preferred_element_type=jnp.float32)  # (TC, Ho, Wo) f32
    o_ref[...] = out.astype(o_ref.dtype)


# -------------------------------- wrapper -----------------------------------
def _pick_channel_block(bc, plane_bytes, max_block_bytes=4 << 20):
    """Channel-block size: divides B*C, keeps the double-buffered input block a
    few MiB (fits default scoped VMEM on v5e/v6e/v7x), and prefers a grid of
    length >= 2 so both v7x TensorCores get balanced work."""
    tc = max(1, min(bc, max_block_bytes // max(plane_bytes, 1)))
    while bc % tc:
        tc -= 1
    if bc // tc < 2:
        t2 = tc // 2
        while t2 >= 1 and bc % t2:
            t2 -= 1
        if t2 >= 1:
            tc = t2
    return tc


def wavelet_tree1(x, sr_ratio=1, ratio=8):
    """Pallas TPU implementation of WaveletTree1.forward.  x: (B, C, H, W)."""
    if ratio != 8 or sr_ratio not in (8, 4, 2):
        return x  # the module's identity branches

    b, c, h, w = x.shape
    assert h % 8 == 0 and w % 8 == 0, "H and W must be divisible by 8"
    n_up = {8: 0, 4: 1, 2: 2}[sr_ratio]
    ho = (h // 8) * (2 ** n_up)
    wo = (w // 8) * (2 ** n_up)
    scale = 0.5 ** (3 + n_up)              # power of two -> exact in bf16/f32

    bc = b * c
    esize = jnp.dtype(x.dtype).itemsize
    tc = _pick_channel_block(bc, h * w * esize)

    # Fused separable Haar maps, built once outside the grid loop.
    l_map = _fused_row_map(h, n_up)                              # (Ho, H), 0/1
    r_map = (scale * _fused_row_map(w, n_up)).T                  # (W, Wo)
    lb = jnp.broadcast_to(l_map[None], (tc, ho, h)).astype(jnp.float32)
    r = r_map.astype(x.dtype)                                    # exact 0 / 2^-k

    x2 = x.reshape(bc, h, w)

    out = pl.pallas_call(
        _wavelet_kernel,
        out_shape=jax.ShapeDtypeStruct((bc, ho, wo), x.dtype),
        grid=(bc // tc,),
        in_specs=[
            pl.BlockSpec((tc, h, w), lambda i: (i, 0, 0)),
            pl.BlockSpec((tc, ho, h), lambda i: (0, 0, 0)),  # VMEM-resident
            pl.BlockSpec((w, wo), lambda i: (0, 0)),         # VMEM-resident
        ],
        out_specs=pl.BlockSpec((tc, ho, wo), lambda i: (i, 0, 0)),
        compiler_params=pltpu.CompilerParams(
            dimension_semantics=("parallel",)),
    )(x2, lb, r)

    return out.reshape(b, c, ho, wo)


# ---------------- pure-JAX reference (for the correctness check) -------------
def _ref_ll(x):
    b_, c_, h_, w_ = x.shape
    return 0.5 * x.reshape(b_, c_, h_ // 2, 2, w_ // 2, 2).sum(axis=(3, 5))


def _ref_up(x):
    return 0.5 * jnp.repeat(jnp.repeat(x, 2, axis=-2), 2, axis=-1)


def _reference(x, sr_ratio, ratio=8):
    if ratio != 8 or sr_ratio not in (8, 4, 2):
        return x
    y = _ref_ll(_ref_ll(_ref_ll(x)))
    for _ in range({8: 0, 4: 1, 2: 2}[sr_ratio]):
        y = _ref_up(y)
    return y


if __name__ == "__main__":
    key = jax.random.PRNGKey(0)
    # Small shapes consistent with the module: B=2, C(in_planes)=4, H=W=32.
    x = jax.random.normal(key, (2, 4, 32, 32), dtype=jnp.float32)

    for sr in (8, 4, 2):
        out = jax.block_until_ready(wavelet_tree1(x, sr_ratio=sr, ratio=8))
        ref = _reference(x, sr_ratio=sr, ratio=8)
        assert out.shape == ref.shape, (sr, out.shape, ref.shape)
        assert jnp.allclose(out, ref, atol=1e-4, rtol=1e-4), f"mismatch sr_ratio={sr}"

    print("KERNEL_OK")
</pallas_src>

<mosaic_0001>
module attributes {stable_mosaic.version = 11 : i64} {
  func.func @_wavelet_kernel(%arg0: i32, %arg1: memref<4x32x32xf32, #tpu.memory_space<vmem>>, %arg2: memref<4x4x32xf32, #tpu.memory_space<vmem>>, %arg3: memref<32x4xf32, #tpu.memory_space<vmem>>, %arg4: memref<4x4x4xf32, #tpu.memory_space<vmem>>) attributes {dimension_semantics = [#tpu.dimension_semantics<parallel>], iteration_bounds = array<i64: 2>, scalar_prefetch = 0 : i64, scratch_operands = 0 : i64, tpu.core_type = #tpu.core_type<tc>, window_params = [{transform_indices = @transform_0, window_bounds = array<i64: 4, 32, 32>}, {pipeline_mode = #tpu.pipeline_mode<synchronous>, transform_indices = @transform_1, window_bounds = array<i64: 4, 4, 32>}, {pipeline_mode = #tpu.pipeline_mode<synchronous>, transform_indices = @transform_2, window_bounds = array<i64: 32, 4>}, {transform_indices = @transform_3, window_bounds = array<i64: 4, 4, 4>}]} {
    %c0 = arith.constant 0 : index
    %c0_0 = arith.constant 0 : index
    %c0_1 = arith.constant 0 : index
    %0 = vector.load %arg1[%c0, %c0_0, %c0_1] : memref<4x32x32xf32, #tpu.memory_space<vmem>>, vector<4x32x32xf32>
    %1 = vector.shape_cast %0 : vector<4x32x32xf32> to vector<128x32xf32>
    %c0_2 = arith.constant 0 : index
    %c0_3 = arith.constant 0 : index
    %2 = vector.load %arg3[%c0_2, %c0_3] : memref<32x4xf32, #tpu.memory_space<vmem>>, vector<32x4xf32>
    %cst = arith.constant dense<0.000000e+00> : vector<128x4xf32>
    %3 = tpu.matmul %1, %2, %cst {dimension_numbers = #tpu.dot_dimension_numbers<[1], [0], [0], [1], [0, 0, 1, 1], [], []>} : vector<128x32xf32>, vector<32x4xf32>, vector<128x4xf32> -> vector<128x4xf32>
    %4 = vector.shape_cast %3 : vector<128x4xf32> to vector<4x32x4xf32>
    %c0_4 = arith.constant 0 : index
    %c0_5 = arith.constant 0 : index
    %c0_6 = arith.constant 0 : index
    %5 = vector.load %arg2[%c0_4, %c0_5, %c0_6] : memref<4x4x32xf32, #tpu.memory_space<vmem>>, vector<4x4x32xf32>
    "tpu.trace_start"() <{level = 10 : i32, message = "bph,bhw->bpw"}> : () -> ()
    %cst_7 = arith.constant dense<0.000000e+00> : vector<4x4x4xf32>
    %6 = tpu.matmul %5, %4, %cst_7 {dimension_numbers = #tpu.dot_dimension_numbers<[2], [1], [1], [2], [0, 0, 0, 1, 1, 2], [0], [0]>} : vector<4x4x32xf32>, vector<4x32x4xf32>, vector<4x4x4xf32> -> vector<4x4x4xf32>
    "tpu.trace_stop"() : () -> ()
    %c0_8 = arith.constant 0 : index
    %c0_9 = arith.constant 0 : index
    %c0_10 = arith.constant 0 : index
    %7 = vector.load %arg4[%c0_8, %c0_9, %c0_10] : memref<4x4x4xf32, #tpu.memory_space<vmem>>, vector<4x4x4xf32>
    tpu.vector_store %arg4[%c0_8, %c0_9, %c0_10], %6 {strides = array<i32>} : memref<4x4x4xf32, #tpu.memory_space<vmem>>, vector<4x4x4xf32>,
    return
  }
  func.func @transform_0(%arg0: i32) -> (i32, i32, i32) {
    %c0_i32 = arith.constant 0 : i32
    %c0_i32_0 = arith.constant 0 : i32
    %c0_i32_1 = arith.constant 0 : i32
    return %arg0, %c0_i32, %c0_i32_0 : i32, i32, i32
  }
  func.func @transform_1(%arg0: i32) -> (i32, i32, i32) {
    %c0_i32 = arith.constant 0 : i32
    %c0_i32_0 = arith.constant 0 : i32
    %c0_i32_1 = arith.constant 0 : i32
    %c0_i32_2 = arith.constant 0 : i32
    return %c0_i32, %c0_i32_0, %c0_i32_1 : i32, i32, i32
  }
  func.func @transform_2(%arg0: i32) -> (i32, i32) {
    %c0_i32 = arith.constant 0 : i32
    %c0_i32_0 = arith.constant 0 : i32
    %c0_i32_1 = arith.constant 0 : i32
    return %c0_i32, %c0_i32_0 : i32, i32
  }
  func.func @transform_3(%arg0: i32) -> (i32, i32, i32) {
    %c0_i32 = arith.constant 0 : i32
    %c0_i32_0 = arith.constant 0 : i32
    %c0_i32_1 = arith.constant 0 : i32
    return %arg0, %c0_i32, %c0_i32_0 : i32, i32, i32
  }
}

</mosaic_0001>

<llo_original>
// kernel: tpu_custom_call.1
$region0: #{tpu_custom_call.1}
  #allocation0 [shape = 'u32[]', space=smem, size = 0x4, offset = 0x4, fixed_abs, tag = 'smem constant byte address 0x4 - core index']
  #allocation1 [shape = 'u32[144,128]{1,0:T(1,128)}', space=vmem, size = 0x12000, scoped, tag = 'internal scratch']
  %s0 = inlined_call_operand.hbm [shape: f32[8,32,32], index: 0, kind: input, shape index: {}]
  %s1 = inlined_call_operand.vmem [shape: f32[4,4,32], index: 1, kind: input, shape index: {}]
  %s2 = inlined_call_operand.vmem [shape: f32[32,4], index: 2, kind: input, shape index: {}]
  %s3 = inlined_call_operand.vmem [shape: f32[8,4,4], index: 3, kind: output, shape index: {}]
  %s4 = sld [smem:[#allocation0]]
  $region49: #{tpu_custom_call.1} parent=0
    _
  %s6 = ssub.s32 1, %s4
  %s7 = scalar_select 0, %s6, %s4
  $region1: #{tpu_custom_call.1} parent=0
    #allocation2 [shape = 'u8[131072]{0}', space=vmem, size = 0x20000, scoped, tag = 'input window, operand 0']
    #allocation3 [shape = 's32[2]{0}', space=sflag, size = 0x8, scoped, tag = 'scoped memory for tpu_custom_call.1']
    %8 = vsyncpa [#allocation3], 0
    %s9 = scalar_lea.sflag [#allocation3], 1
    %10 = vsyncpa %s9, 0
    loop: start=0, step=1, limit=4
    $region2: #{tpu_custom_call.1} parent=1 // loop_pre_header
      _
    $region3: #{tpu_custom_call.1} parent=1 // loop_header
      %s12 = sphi 0, %s16
      %p13 = scmp.ge.s32.totalorder %s12, 4
      %s22 = sphi 0, %s24
      %s25 = sphi 0, %s22
      %s26 = sphi 0, %s25
      %s42 = sphi 0, %s26
      %s46 = sphi 0, %s46
      %s48 = sphi 0, %s46
      %s49 = sphi 0, %s48
      %s63 = sphi 0, %s49
      %s67 = sphi 0, %s67
      %s69 = sphi 0, %s67
      %s70 = sphi 0, %s69
      %s84 = sphi 0, %s70
      %s90 = sphi 0, %s92
      %s93 = sphi 0, %s90
      %s94 = sphi 0, %s93
      %s110 = sphi 0, %s94
    $region4: #{tpu_custom_call.1} parent=1 // loop_header_branch
      %15 = sbr.rel (%p13) target = $region8
    $region5: #{tpu_custom_call.1} parent=1 // loop_body
      %s17 = ssub.s32 %s12, 1
      %s18 = ssub.s32 %s12, 2
      %s19 = sadd.s32 %s12, 1
      %s20 = ssub.s32 %s12, %s19
      %p21 = scmp.eq.s32.totalorder %s20, 0
      %s23 = sadd.s32 %s22, 1
      %s24 = scalar_select %p21, %s22, %s23
      %p27 = pneg %p21
      %p28 = scmp.eq.s32.totalorder %s12, 1
      %p29 = por %p27, %p28
      %p30 = scmp.ne.s32.totalorder %s22, %s25
      %p31 = scmp.eq.s32.totalorder %s12, 0
      %p32 = por %p30, %p31
      %p33 = scmp.ne.s32.totalorder %s22, %s25
      %p34 = scmp.eq.s32.totalorder %s17, 1
      %p35 = por %p33, %p34
      %p36 = scmp.ne.s32.totalorder %s25, %s26
      %p37 = scmp.eq.s32.totalorder %s17, 0
      %p38 = por %p36, %p37
      %p39 = scmp.ne.s32.totalorder %s25, %s26
      %p40 = scmp.eq.s32.totalorder %s18, 1
      %p41 = por %p39, %p40
      %p43 = scmp.ne.s32.totalorder %s26, %s42
      %p44 = scmp.eq.s32.totalorder %s18, 0
      %p45 = por %p43, %p44
      %s47 = sadd.s32 %s46, 1
      %p50 = scmp.eq.s32.totalorder %s12, 1
      %p51 = scmp.ne.s32.totalorder %s46, %s48
      %p52 = scmp.eq.s32.totalorder %s12, 0
      %p53 = por %p51, %p52
      %p54 = scmp.ne.s32.totalorder %s46, %s48
      %p55 = scmp.eq.s32.totalorder %s17, 1
      %p56 = por %p54, %p55
      %p57 = scmp.ne.s32.totalorder %s48, %s49
      %p58 = scmp.eq.s32.totalorder %s17, 0
      %p59 = por %p57, %p58
      %p60 = scmp.ne.s32.totalorder %s48, %s49
      %p61 = scmp.eq.s32.totalorder %s18, 1
      %p62 = por %p60, %p61
      %p64 = scmp.ne.s32.totalorder %s49, %s63
      %p65 = scmp.eq.s32.totalorder %s18, 0
      %p66 = por %p64, %p65
      %s68 = sadd.s32 %s67, 1
      %p71 = scmp.eq.s32.totalorder %s12, 1
      %p72 = scmp.ne.s32.totalorder %s67, %s69
      %p73 = scmp.eq.s32.totalorder %s12, 0
      %p74 = por %p72, %p73
      %p75 = scmp.ne.s32.totalorder %s67, %s69
      %p76 = scmp.eq.s32.totalorder %s17, 1
      %p77 = por %p75, %p76
      %p78 = scmp.ne.s32.totalorder %s69, %s70
      %p79 = scmp.eq.s32.totalorder %s17, 0
      %p80 = por %p78, %p79
      %p81 = scmp.ne.s32.totalorder %s69, %s70
      %p82 = scmp.eq.s32.totalorder %s18, 1
      %p83 = por %p81, %p82
      %p85 = scmp.ne.s32.totalorder %s70, %s84
      %p86 = scmp.eq.s32.totalorder %s18, 0
      %p87 = por %p85, %p86
      %s88 = ssub.s32 %s12, %s19
      %p89 = scmp.eq.s32.totalorder %s88, 0
      %s91 = sadd.s32 %s90, 1
      %s92 = scalar_select %p89, %s90, %s91
      %p95 = pneg %p89
      %p96 = scmp.eq.s32.totalorder %s12, 1
      %p97 = por %p95, %p96
      %p98 = scmp.ne.s32.totalorder %s90, %s93
      %p99 = scmp.eq.s32.totalorder %s12, 0
      %p100 = por %p98, %p99
      %p101 = scmp.ne.s32.totalorder %s90, %s93
      %p102 = scmp.eq.s32.totalorder %s17, 1
      %p103 = por %p101, %p102
      %p104 = scmp.ne.s32.totalorder %s93, %s94
      %p105 = scmp.eq.s32.totalorder %s17, 0
      %p106 = por %p104, %p105
      %p107 = scmp.ne.s32.totalorder %s93, %s94
      %p108 = scmp.eq.s32.totalorder %s18, 1
      %p109 = por %p107, %p108
      %p111 = scmp.ne.s32.totalorder %s94, %s110
      %p112 = scmp.eq.s32.totalorder %s18, 0
      %p113 = por %p111, %p112
      %p114 = scmp.le.s32.totalorder 1, %s12
      %p115 = scmp.lt.s32.totalorder %s12, 3
      %p116 = pnand %p114, %p115
      %p117 = pneg %p116
      // Predicated region
      $region9: #{tpu_custom_call.1} parent=5 // pred_check
        _
      $region10: #{tpu_custom_call.1} parent=5 // pred_check_branch
        %119 = sbr.rel (%p116) target = $region12
      $region11: #{tpu_custom_call.1} parent=5 // pred_region
        %s120 = ssub.s32 %s12, 1
        // Predicated region
        $region13: #{tpu_custom_call.1} parent=11 // pred_check
          %p121 = pneg %p59
        $region14: #{tpu_custom_call.1} parent=11 // pred_check_branch
          %123 = sbr.rel (%p121) target = $region16
        $region15: #{tpu_custom_call.1} parent=11 // pred_region
          _
        $region16: #{tpu_custom_call.1} parent=11 // pred_fallthru
          _
        // Predicated region
        $region17: #{tpu_custom_call.1} parent=11 // pred_check
          %p124 = pneg %p80
        $region18: #{tpu_custom_call.1} parent=11 // pred_check_branch
          %126 = sbr.rel (%p124) target = $region20
        $region19: #{tpu_custom_call.1} parent=11 // pred_region
          _
        $region20: #{tpu_custom_call.1} parent=11 // pred_fallthru
          _
      $region12: #{tpu_custom_call.1} parent=5 // pred_fallthru
        _
      %p127 = scmp.lt.s32.totalorder %s12, 2
      // Predicated region
      $region21: #{tpu_custom_call.1} parent=5 // pred_check
        %p128 = pneg %p127
      $region22: #{tpu_custom_call.1} parent=5 // pred_check_branch
        %130 = sbr.rel (%p128) target = $region24
      $region23: #{tpu_custom_call.1} parent=5 // pred_region
        // Predicated region
        $region25: #{tpu_custom_call.1} parent=23 // pred_check
          %p131 = pneg %p32
        $region26: #{tpu_custom_call.1} parent=23 // pred_check_branch
          %133 = sbr.rel (%p131) target = $region28
        $region27: #{tpu_custom_call.1} parent=23 // pred_region
          %s134 = sand.u32 %s22, 1
          %s135 = scalar_lea.sflag [#allocation3], %s134
          %s136 = sand.u32 %s22, 1
          %s137 = smul.addr %s136, 128
          %s138 = scalar_lea.vmem [#allocation2], %s137
          %s139 = smul.u32 4, %s12
          %s141 = ssub.s32 2048, 2048
          %142 = vsyncadd %s135, %s141
          %s143 = smul.addr %s139, 4
          %s144 = smul.addr %s143, 128
          %s145 = scalar_lea.hbm %s0, %s144
          %s146 = sshll.u32 %s138, 4
          %s147 = int_to_ptr.vmem [resolvable:$true] %s146
          %152 = dma.hbm_to_vmem [thread:$0]  %s145, 2048, %s147, %s135, 128, 128, 8
        $region28: #{tpu_custom_call.1} parent=23 // pred_fallthru
          _
      $region24: #{tpu_custom_call.1} parent=5 // pred_fallthru
        _
      %p153 = scmp.le.s32.totalorder 1, %s12
      %p154 = scmp.lt.s32.totalorder %s12, 3
      %p155 = pnand %p153, %p154
      %p156 = pneg %p155
      // Predicated region
      $region29: #{tpu_custom_call.1} parent=5 // pred_check
        _
      $region30: #{tpu_custom_call.1} parent=5 // pred_check_branch
        %158 = sbr.rel (%p155) target = $region32
      $region31: #{tpu_custom_call.1} parent=5 // pred_region
        %s159 = ssub.s32 %s12, 1
        %s160 = sand.u32 %s25, 1
        %s161 = scalar_lea.sflag [#allocation3], %s160
        %s162 = sand.u32 %s25, 1
        %s163 = smul.addr %s162, 128
        %s164 = scalar_lea.vmem [#allocation2], %s163
        // Predicated region
        $region33: #{tpu_custom_call.1} parent=31 // pred_check
          %p165 = pneg %p38
        $region34: #{tpu_custom_call.1} parent=31 // pred_check_branch
          %167 = sbr.rel (%p165) target = $region36
        $region35: #{tpu_custom_call.1} parent=31 // pred_region
          %168 = dma.done %s161, 2048
        $region36: #{tpu_custom_call.1} parent=31 // pred_fallthru
          _
        %s169 = sand.u32 %s25, 1
        %s170 = scalar_lea.sflag [#allocation3], %s169
        %s171 = sand.u32 %s25, 1
        %s172 = smul.addr %s171, 128
        %s173 = scalar_lea.vmem [#allocation2], %s172
        %p174 = pneg %p38
        %p175 = pneg %p35
        %p176 = pneg %p59
        %p177 = pneg %p56
        %p178 = pneg %p80
        %p179 = pneg %p77
        %p180 = pneg %p106
        %p181 = pneg %p103
        %s182 = smul.u32 4, %s17
        %p183 = scmp.lt.s32.totalorder %s182, 7
        %s184 = scalar_select %p183, %s182, 7
        %s185 = smul.addr %s184, 4
        %s186 = scalar_lea.vmem %s3, %s185
        %s187 = smul.u32 4, %s17
        %s188 = smul.u32 4, %s17
        %p189 = scmp.lt.s32.totalorder %s188, 7
        %s190 = scalar_select %p189, %s188, 7
        %s191 = smul.addr %s190, 4
        %s192 = scalar_lea.vmem %s3, %s191
        %s193 = smul.u32 4, %s17
        %v194 = vld [vmem:[%s164] sm:$0xff]
        %v195 = vld [vmem:[%s164 + $0x8] sm:$0xff]
        %v196 = vld [vmem:[%s164 + $0x10] sm:$0xff]
        %v197 = vld [vmem:[%s164 + $0x18] sm:$0xff]
        %v198 = vld [vmem:[%s164 + $0x20] sm:$0xff]
        %v199 = vld [vmem:[%s164 + $0x28] sm:$0xff]
        %v200 = vld [vmem:[%s164 + $0x30] sm:$0xff]
        %v201 = vld [vmem:[%s164 + $0x38] sm:$0xff]
        %v202 = vld [vmem:[%s164 + $0x40] sm:$0xff]
        %v203 = vld [vmem:[%s164 + $0x48] sm:$0xff]
        %v204 = vld [vmem:[%s164 + $0x50] sm:$0xff]
        %v205 = vld [vmem:[%s164 + $0x58] sm:$0xff]
        %v206 = vld [vmem:[%s164 + $0x60] sm:$0xff]
        %v207 = vld [vmem:[%s164 + $0x68] sm:$0xff]
        %v208 = vld [vmem:[%s164 + $0x70] sm:$0xff]
        %v209 = vld [vmem:[%s164 + $0x78] sm:$0xff]
        %v210 = vld [vmem:[%s2] sm:$0xff]
        %v211 = vld [vmem:[%s2 + $0x8] sm:$0xff]
        %v212 = vld [vmem:[%s2 + $0x10] sm:$0xff]
        %v213 = vld [vmem:[%s2 + $0x18] sm:$0xff]
        %vm214 = vcmask 261120
        %v216 = vsel %vm214, %v194, 0
        %v219 = vsel %vm214, %v195, 0
        %v222 = vsel %vm214, %v196, 0
        %v225 = vsel %vm214, %v197, 0
        %v228 = vsel %vm214, %v198, 0
        %v231 = vsel %vm214, %v199, 0
        %v234 = vsel %vm214, %v200, 0
        %v237 = vsel %vm214, %v201, 0
        %v240 = vsel %vm214, %v202, 0
        %v243 = vsel %vm214, %v203, 0
        %v246 = vsel %vm214, %v204, 0
        %v249 = vsel %vm214, %v205, 0
        %v252 = vsel %vm214, %v206, 0
        %v255 = vsel %vm214, %v207, 0
        %v258 = vsel %vm214, %v208, 0
        %v261 = vsel %vm214, %v209, 0
        %263 = vmatprep.subr.mxu0 0.0
        %264 = vmatpush1.msra.mxu0 0.0
        %265 = vmatprep.subr.mxu0 0.0
        %266 = vmatpush1.msra.mxu0 0.0
        %267 = vmatprep.subr.mxu0 0.0
        %268 = vmatpush1.msra.mxu0 0.0
        %269 = vmatprep.subr.mxu0 0.0
        %270 = vmatpush1.msra.mxu0 0.0
        %271 = vmatprep.subr.mxu0 0.0
        %272 = vmatpush1.msra.mxu0 0.0
        %273 = vmatprep.subr.mxu0 0.0
        %274 = vmatpush1.msra.mxu0 0.0
        %275 = vmatprep.subr.mxu0 0.0
        %276 = vmatpush1.msra.mxu0 0.0
        %277 = vmatprep.subr.mxu0 0.0
        %278 = vmatpush1.msra.mxu0 0.0
        %279 = vmatprep.subr.mxu0 0.0
        %280 = vmatpush1.msra.mxu0 0.0
        %281 = vmatprep.subr.mxu0 0.0
        %282 = vmatpush1.msra.mxu0 0.0
        %283 = vmatprep.subr.mxu0 0.0
        %284 = vmatpush1.msra.mxu0 0.0
        %285 = vmatprep.subr.mxu0 0.0
        %286 = vmatpush1.msra.mxu0 0.0
        %287 = vmatprep.subr.mxu0 0.0
        %288 = vmatpush1.msra.mxu0 %v213
        %289 = vmatprep.subr.mxu0 0.0
        %290 = vmatpush1.msra.mxu0 %v212
        %291 = vmatprep.subr.mxu0 0.0
        %292 = vmatpush1.msra.mxu0 %v211
        %293 = vmatprep.subr.mxu0 0.0
        %294 = vmatpush1.msra.mxu0 %v210
        %295 = vmatprep.subr.mxu0 0.0
        %296 = vmatpush2.msra.mxu0 0.0
        %297 = vmatprep.subr.mxu0 0.0
        %298 = vmatpush2.msra.mxu0 0.0
        %299 = vmatprep.subr.mxu0 0.0
        %300 = vmatpush2.msra.mxu0 0.0
        %301 = vmatprep.subr.mxu0 0.0
        %302 = vmatpush2.msra.mxu0 0.0
        %303 = vmatprep.subr.mxu0 0.0
        %304 = vmatpush2.msra.mxu0 0.0
        %305 = vmatprep.subr.mxu0 0.0
        %306 = vmatpush2.msra.mxu0 0.0
        %307 = vmatprep.subr.mxu0 0.0
        %308 = vmatpush2.msra.mxu0 0.0
        %309 = vmatprep.subr.mxu0 0.0
        %310 = vmatpush2.msra.mxu0 0.0
        %311 = vmatprep.subr.mxu0 0.0
        %312 = vmatpush2.msra.mxu0 0.0
        %313 = vmatprep.subr.mxu0 0.0
        %314 = vmatpush2.msra.mxu0 0.0
        %315 = vmatprep.subr.mxu0 0.0
        %316 = vmatpush2.msra.mxu0 0.0
        %317 = vmatprep.subr.mxu0 0.0
        %318 = vmatpush2.msra.mxu0 0.0
        %319 = vmatprep.subr.mxu0 0.0
        %320 = vmatpush2.msra.mxu0 0.0
        %321 = vmatprep.subr.mxu0 0.0
        %322 = vmatpush2.msra.mxu0 0.0
        %323 = vmatprep.subr.mxu0 0.0
        %324 = vmatpush2.msra.mxu0 0.0
        %325 = vmatprep.subr.mxu0 0.0
        %326 = vmatpush2.msra.mxu0 0.0
        %327 = vmatprep.mubr.f32.mxu0 0.0
        %328 = vmatmul.mubr.f32.gmra.mxu0 %v216
        %v329 = vpop.f32.mrf.mxu0
        %v330 = vadd.f32 0.0, %v329
        %v331 = vpop.f32.mrf.mxu0
        %332 = vmatprep.mubr.f32.mxu0 0.0
        %333 = vmatmul.mubr.f32.gmra.mxu0 %v219
        %v334 = vpop.f32.mrf.mxu0
        %v335 = vadd.f32 0.0, %v334
        %v336 = vpop.f32.mrf.mxu0
        %337 = vmatprep.mubr.f32.mxu0 0.0
        %338 = vmatmul.mubr.f32.gmra.mxu0 %v222
        %v339 = vpop.f32.mrf.mxu0
        %v340 = vadd.f32 0.0, %v339
        %v341 = vpop.f32.mrf.mxu0
        %342 = vmatprep.mubr.f32.mxu0 0.0
        %343 = vmatmul.mubr.f32.gmra.mxu0 %v225
        %v344 = vpop.f32.mrf.mxu0
        %v345 = vadd.f32 0.0, %v344
        %v346 = vpop.f32.mrf.mxu0
        %347 = vmatprep.mubr.f32.mxu0 0.0
        %348 = vmatmul.mubr.f32.gmra.mxu0 %v228
        %v349 = vpop.f32.mrf.mxu0
        %v350 = vadd.f32 0.0, %v349
        %v351 = vpop.f32.mrf.mxu0
        %352 = vmatprep.mubr.f32.mxu0 0.0
        %353 = vmatmul.mubr.f32.gmra.mxu0 %v231
        %v354 = vpop.f32.mrf.mxu0
        %v355 = vadd.f32 0.0, %v354
        %v356 = vpop.f32.mrf.mxu0
        %357 = vmatprep.mubr.f32.mxu0 0.0
        %358 = vmatmul.mubr.f32.gmra.mxu0 %v234
        %v359 = vpop.f32.mrf.mxu0
        %v360 = vadd.f32 0.0, %v359
        %v361 = vpop.f32.mrf.mxu0
        %362 = vmatprep.mubr.f32.mxu0 0.0
        %363 = vmatmul.mubr.f32.gmra.mxu0 %v237
        %v364 = vpop.f32.mrf.mxu0
        %v365 = vadd.f32 0.0, %v364
        %v366 = vpop.f32.mrf.mxu0
        %367 = vmatprep.mubr.f32.mxu0 0.0
        %368 = vmatmul.mubr.f32.gmra.mxu0 %v240
        %v369 = vpop.f32.mrf.mxu0
        %v370 = vadd.f32 0.0, %v369
        %v371 = vpop.f32.mrf.mxu0
        %372 = vmatprep.mubr.f32.mxu0 0.0
        %373 = vmatmul.mubr.f32.gmra.mxu0 %v243
        %v374 = vpop.f32.mrf.mxu0
        %v375 = vadd.f32 0.0, %v374
        %v376 = vpop.f32.mrf.mxu0
        %377 = vmatprep.mubr.f32.mxu0 0.0
        %378 = vmatmul.mubr.f32.gmra.mxu0 %v246
        %v379 = vpop.f32.mrf.mxu0
        %v380 = vadd.f32 0.0, %v379
        %v381 = vpop.f32.mrf.mxu0
        %382 = vmatprep.mubr.f32.mxu0 0.0
        %383 = vmatmul.mubr.f32.gmra.mxu0 %v249
        %v384 = vpop.f32.mrf.mxu0
        %v385 = vadd.f32 0.0, %v384
        %v386 = vpop.f32.mrf.mxu0
        %387 = vmatprep.mubr.f32.mxu0 0.0
        %388 = vmatmul.mubr.f32.gmra.mxu0 %v252
        %v389 = vpop.f32.mrf.mxu0
        %v390 = vadd.f32 0.0, %v389
        %v391 = vpop.f32.mrf.mxu0
        %392 = vmatprep.mubr.f32.mxu0 0.0
        %393 = vmatmul.mubr.f32.gmra.mxu0 %v255
        %v394 = vpop.f32.mrf.mxu0
        %v395 = vadd.f32 0.0, %v394
        %v396 = vpop.f32.mrf.mxu0
        %397 = vmatprep.mubr.f32.mxu0 0.0
        %398 = vmatmul.mubr.f32.gmra.mxu0 %v258
        %v399 = vpop.f32.mrf.mxu0
        %v400 = vadd.f32 0.0, %v399
        %v401 = vpop.f32.mrf.mxu0
        %402 = vmatprep.mubr.f32.mxu0 0.0
        %403 = vmatmul.mubr.f32.gmra.mxu0 %v261
        %v404 = vpop.f32.mrf.mxu0
        %v405 = vadd.f32 0.0, %v404
        %v406 = vpop.f32.mrf.mxu0
        %407 = vdwg.mxu0
        %v408 = vld [vmem:[%s1] sm:$0xf]
        %v409 = vld [vmem:[%s1 + $0x4] sm:$0xf]
        %v410 = vld [vmem:[%s1 + $0x8] sm:$0xf]
        %v411 = vld [vmem:[%s1 + $0xc] sm:$0xf]
        %v413 = vsel %vm214, %v408, 0
        %415 = vmatprep.subr.mxu0 0.0
        %416 = vmatpush1.msra.mxu0 0.0
        %417 = vmatprep.subr.mxu0 0.0
        %418 = vmatpush1.msra.mxu0 0.0
        %419 = vmatprep.subr.mxu0 0.0
        %420 = vmatpush1.msra.mxu0 0.0
        %421 = vmatprep.subr.mxu0 0.0
        %422 = vmatpush1.msra.mxu0 0.0
        %423 = vmatprep.subr.mxu0 0.0
        %424 = vmatpush1.msra.mxu0 0.0
        %425 = vmatprep.subr.mxu0 0.0
        %426 = vmatpush1.msra.mxu0 0.0
        %427 = vmatprep.subr.mxu0 0.0
        %428 = vmatpush1.msra.mxu0 0.0
        %429 = vmatprep.subr.mxu0 0.0
        %430 = vmatpush1.msra.mxu0 0.0
        %431 = vmatprep.subr.mxu0 0.0
        %432 = vmatpush1.msra.mxu0 0.0
        %433 = vmatprep.subr.mxu0 0.0
        %434 = vmatpush1.msra.mxu0 0.0
        %435 = vmatprep.subr.mxu0 0.0
        %436 = vmatpush1.msra.mxu0 0.0
        %437 = vmatprep.subr.mxu0 0.0
        %438 = vmatpush1.msra.mxu0 0.0
        %439 = vmatprep.subr.mxu0 0.0
        %440 = vmatpush1.msra.mxu0 %v345
        %441 = vmatprep.subr.mxu0 0.0
        %442 = vmatpush1.msra.mxu0 %v340
        %443 = vmatprep.subr.mxu0 0.0
        %444 = vmatpush1.msra.mxu0 %v335
        %445 = vmatprep.subr.mxu0 0.0
        %446 = vmatpush1.msra.mxu0 %v330
        %447 = vmatprep.subr.mxu0 0.0
        %448 = vmatpush2.msra.mxu0 0.0
        %449 = vmatprep.subr.mxu0 0.0
        %450 = vmatpush2.msra.mxu0 0.0
        %451 = vmatprep.subr.mxu0 0.0
        %452 = vmatpush2.msra.mxu0 0.0
        %453 = vmatprep.subr.mxu0 0.0
        %454 = vmatpush2.msra.mxu0 0.0
        %455 = vmatprep.subr.mxu0 0.0
        %456 = vmatpush2.msra.mxu0 0.0
        %457 = vmatprep.subr.mxu0 0.0
        %458 = vmatpush2.msra.mxu0 0.0
        %459 = vmatprep.subr.mxu0 0.0
        %460 = vmatpush2.msra.mxu0 0.0
        %461 = vmatprep.subr.mxu0 0.0
        %462 = vmatpush2.msra.mxu0 0.0
        %463 = vmatprep.subr.mxu0 0.0
        %464 = vmatpush2.msra.mxu0 0.0
        %465 = vmatprep.subr.mxu0 0.0
        %466 = vmatpush2.msra.mxu0 0.0
        %467 = vmatprep.subr.mxu0 0.0
        %468 = vmatpush2.msra.mxu0 0.0
        %469 = vmatprep.subr.mxu0 0.0
        %470 = vmatpush2.msra.mxu0 0.0
        %471 = vmatprep.subr.mxu0 0.0
        %472 = vmatpush2.msra.mxu0 0.0
        %473 = vmatprep.subr.mxu0 0.0
        %474 = vmatpush2.msra.mxu0 0.0
        %475 = vmatprep.subr.mxu0 0.0
        %476 = vmatpush2.msra.mxu0 0.0
        %477 = vmatprep.subr.mxu0 0.0
        %478 = vmatpush2.msra.mxu0 0.0
        %479 = vmatprep.mubr.f32.mxu0 0.0
        %480 = vmatmul.mubr.f32.gmra.mxu0 %v413
        %v481 = vpop.f32.mrf.mxu0
        %v482 = vadd.f32 0.0, %v481
        %v483 = vpop.f32.mrf.mxu0
        %484 = vdwg.mxu0
        %v486 = vsel %vm214, %v409, 0
        %488 = vmatprep.subr.mxu0 0.0
        %489 = vmatpush1.msra.mxu0 0.0
        %490 = vmatprep.subr.mxu0 0.0
        %491 = vmatpush1.msra.mxu0 0.0
        %492 = vmatprep.subr.mxu0 0.0
        %493 = vmatpush1.msra.mxu0 0.0
        %494 = vmatprep.subr.mxu0 0.0
        %495 = vmatpush1.msra.mxu0 0.0
        %496 = vmatprep.subr.mxu0 0.0
        %497 = vmatpush1.msra.mxu0 0.0
        %498 = vmatprep.subr.mxu0 0.0
        %499 = vmatpush1.msra.mxu0 0.0
        %500 = vmatprep.subr.mxu0 0.0
        %501 = vmatpush1.msra.mxu0 0.0
        %502 = vmatprep.subr.mxu0 0.0
        %503 = vmatpush1.msra.mxu0 0.0
        %504 = vmatprep.subr.mxu0 0.0
        %505 = vmatpush1.msra.mxu0 0.0
        %506 = vmatprep.subr.mxu0 0.0
        %507 = vmatpush1.msra.mxu0 0.0
        %508 = vmatprep.subr.mxu0 0.0
        %509 = vmatpush1.msra.mxu0 0.0
        %510 = vmatprep.subr.mxu0 0.0
        %511 = vmatpush1.msra.mxu0 0.0
        %512 = vmatprep.subr.mxu0 0.0
        %513 = vmatpush1.msra.mxu0 %v365
        %514 = vmatprep.subr.mxu0 0.0
        %515 = vmatpush1.msra.mxu0 %v360
        %516 = vmatprep.subr.mxu0 0.0
        %517 = vmatpush1.msra.mxu0 %v355
        %518 = vmatprep.subr.mxu0 0.0
        %519 = vmatpush1.msra.mxu0 %v350
        %520 = vmatprep.subr.mxu0 0.0
        %521 = vmatpush2.msra.mxu0 0.0
        %522 = vmatprep.subr.mxu0 0.0
        %523 = vmatpush2.msra.mxu0 0.0
        %524 = vmatprep.subr.mxu0 0.0
        %525 = vmatpush2.msra.mxu0 0.0
        %526 = vmatprep.subr.mxu0 0.0
        %527 = vmatpush2.msra.mxu0 0.0
        %528 = vmatprep.subr.mxu0 0.0
        %529 = vmatpush2.msra.mxu0 0.0
        %530 = vmatprep.subr.mxu0 0.0
        %531 = vmatpush2.msra.mxu0 0.0
        %532 = vmatprep.subr.mxu0 0.0
        %533 = vmatpush2.msra.mxu0 0.0
        %534 = vmatprep.subr.mxu0 0.0
        %535 = vmatpush2.msra.mxu0 0.0
        %536 = vmatprep.subr.mxu0 0.0
        %537 = vmatpush2.msra.mxu0 0.0
        %538 = vmatprep.subr.mxu0 0.0
        %539 = vmatpush2.msra.mxu0 0.0
        %540 = vmatprep.subr.mxu0 0.0
        %541 = vmatpush2.msra.mxu0 0.0
        %542 = vmatprep.subr.mxu0 0.0
        %543 = vmatpush2.msra.mxu0 0.0
        %544 = vmatprep.subr.mxu0 0.0
        %545 = vmatpush2.msra.mxu0 0.0
        %546 = vmatprep.subr.mxu0 0.0
        %547 = vmatpush2.msra.mxu0 0.0
        %548 = vmatprep.subr.mxu0 0.0
        %549 = vmatpush2.msra.mxu0 0.0
        %550 = vmatprep.subr.mxu0 0.0
        %551 = vmatpush2.msra.mxu0 0.0
        %552 = vmatprep.mubr.f32.mxu0 0.0
        %553 = vmatmul.mubr.f32.gmra.mxu0 %v486
        %v554 = vpop.f32.mrf.mxu0
        %v555 = vadd.f32 0.0, %v554
        %v556 = vpop.f32.mrf.mxu0
        %557 = vdwg.mxu0
        %v559 = vsel %vm214, %v410, 0
        %561 = vmatprep.subr.mxu0 0.0
        %562 = vmatpush1.msra.mxu0 0.0
        %563 = vmatprep.subr.mxu0 0.0
        %564 = vmatpush1.msra.mxu0 0.0
        %565 = vmatprep.subr.mxu0 0.0
        %566 = vmatpush1.msra.mxu0 0.0
        %567 = vmatprep.subr.mxu0 0.0
        %568 = vmatpush1.msra.mxu0 0.0
        %569 = vmatprep.subr.mxu0 0.0
        %570 = vmatpush1.msra.mxu0 0.0
        %571 = vmatprep.subr.mxu0 0.0
        %572 = vmatpush1.msra.mxu0 0.0
        %573 = vmatprep.subr.mxu0 0.0
        %574 = vmatpush1.msra.mxu0 0.0
        %575 = vmatprep.subr.mxu0 0.0
        %576 = vmatpush1.msra.mxu0 0.0
        %577 = vmatprep.subr.mxu0 0.0
        %578 = vmatpush1.msra.mxu0 0.0
        %579 = vmatprep.subr.mxu0 0.0
        %580 = vmatpush1.msra.mxu0 0.0
        %581 = vmatprep.subr.mxu0 0.0
        %582 = vmatpush1.msra.mxu0 0.0
        %583 = vmatprep.subr.mxu0 0.0
        %584 = vmatpush1.msra.mxu0 0.0
        %585 = vmatprep.subr.mxu0 0.0
        %586 = vmatpush1.msra.mxu0 %v385
        %587 = vmatprep.subr.mxu0 0.0
        %588 = vmatpush1.msra.mxu0 %v380
        %589 = vmatprep.subr.mxu0 0.0
        %590 = vmatpush1.msra.mxu0 %v375
        %591 = vmatprep.subr.mxu0 0.0
        %592 = vmatpush1.msra.mxu0 %v370
        %593 = vmatprep.subr.mxu0 0.0
        %594 = vmatpush2.msra.mxu0 0.0
        %595 = vmatprep.subr.mxu0 0.0
        %596 = vmatpush2.msra.mxu0 0.0
        %597 = vmatprep.subr.mxu0 0.0
        %598 = vmatpush2.msra.mxu0 0.0
        %599 = vmatprep.subr.mxu0 0.0
        %600 = vmatpush2.msra.mxu0 0.0
        %601 = vmatprep.subr.mxu0 0.0
        %602 = vmatpush2.msra.mxu0 0.0
        %603 = vmatprep.subr.mxu0 0.0
        %604 = vmatpush2.msra.mxu0 0.0
        %605 = vmatprep.subr.mxu0 0.0
        %606 = vmatpush2.msra.mxu0 0.0
        %607 = vmatprep.subr.mxu0 0.0
        %608 = vmatpush2.msra.mxu0 0.0
        %609 = vmatprep.subr.mxu0 0.0
        %610 = vmatpush2.msra.mxu0 0.0
        %611 = vmatprep.subr.mxu0 0.0
        %612 = vmatpush2.msra.mxu0 0.0
        %613 = vmatprep.subr.mxu0 0.0
        %614 = vmatpush2.msra.mxu0 0.0
        %615 = vmatprep.subr.mxu0 0.0
        %616 = vmatpush2.msra.mxu0 0.0
        %617 = vmatprep.subr.mxu0 0.0
        %618 = vmatpush2.msra.mxu0 0.0
        %619 = vmatprep.subr.mxu0 0.0
        %620 = vmatpush2.msra.mxu0 0.0
        %621 = vmatprep.subr.mxu0 0.0
        %622 = vmatpush2.msra.mxu0 0.0
        %623 = vmatprep.subr.mxu0 0.0
        %624 = vmatpush2.msra.mxu0 0.0
        %625 = vmatprep.mubr.f32.mxu0 0.0
        %626 = vmatmul.mubr.f32.gmra.mxu0 %v559
        %v627 = vpop.f32.mrf.mxu0
        %v628 = vadd.f32 0.0, %v627
        %v629 = vpop.f32.mrf.mxu0
        %630 = vdwg.mxu0
        %v632 = vsel %vm214, %v411, 0
        %634 = vmatprep.subr.mxu0 0.0
        %635 = vmatpush1.msra.mxu0 0.0
        %636 = vmatprep.subr.mxu0 0.0
        %637 = vmatpush1.msra.mxu0 0.0
        %638 = vmatprep.subr.mxu0 0.0
        %639 = vmatpush1.msra.mxu0 0.0
        %640 = vmatprep.subr.mxu0 0.0
        %641 = vmatpush1.msra.mxu0 0.0
        %642 = vmatprep.subr.mxu0 0.0
        %643 = vmatpush1.msra.mxu0 0.0
        %644 = vmatprep.subr.mxu0 0.0
        %645 = vmatpush1.msra.mxu0 0.0
        %646 = vmatprep.subr.mxu0 0.0
        %647 = vmatpush1.msra.mxu0 0.0
        %648 = vmatprep.subr.mxu0 0.0
        %649 = vmatpush1.msra.mxu0 0.0
        %650 = vmatprep.subr.mxu0 0.0
        %651 = vmatpush1.msra.mxu0 0.0
        %652 = vmatprep.subr.mxu0 0.0
        %653 = vmatpush1.msra.mxu0 0.0
        %654 = vmatprep.subr.mxu0 0.0
        %655 = vmatpush1.msra.mxu0 0.0
        %656 = vmatprep.subr.mxu0 0.0
        %657 = vmatpush1.msra.mxu0 0.0
        %658 = vmatprep.subr.mxu0 0.0
        %659 = vmatpush1.msra.mxu0 %v405
        %660 = vmatprep.subr.mxu0 0.0
        %661 = vmatpush1.msra.mxu0 %v400
        %662 = vmatprep.subr.mxu0 0.0
        %663 = vmatpush1.msra.mxu0 %v395
        %664 = vmatprep.subr.mxu0 0.0
        %665 = vmatpush1.msra.mxu0 %v390
        %666 = vmatprep.subr.mxu0 0.0
        %667 = vmatpush2.msra.mxu0 0.0
        %668 = vmatprep.subr.mxu0 0.0
        %669 = vmatpush2.msra.mxu0 0.0
        %670 = vmatprep.subr.mxu0 0.0
        %671 = vmatpush2.msra.mxu0 0.0
        %672 = vmatprep.subr.mxu0 0.0
        %673 = vmatpush2.msra.mxu0 0.0
        %674 = vmatprep.subr.mxu0 0.0
        %675 = vmatpush2.msra.mxu0 0.0
        %676 = vmatprep.subr.mxu0 0.0
        %677 = vmatpush2.msra.mxu0 0.0
        %678 = vmatprep.subr.mxu0 0.0
        %679 = vmatpush2.msra.mxu0 0.0
        %680 = vmatprep.subr.mxu0 0.0
        %681 = vmatpush2.msra.mxu0 0.0
        %682 = vmatprep.subr.mxu0 0.0
        %683 = vmatpush2.msra.mxu0 0.0
        %684 = vmatprep.subr.mxu0 0.0
        %685 = vmatpush2.msra.mxu0 0.0
        %686 = vmatprep.subr.mxu0 0.0
        %687 = vmatpush2.msra.mxu0 0.0
        %688 = vmatprep.subr.mxu0 0.0
        %689 = vmatpush2.msra.mxu0 0.0
        %690 = vmatprep.subr.mxu0 0.0
        %691 = vmatpush2.msra.mxu0 0.0
        %692 = vmatprep.subr.mxu0 0.0
        %693 = vmatpush2.msra.mxu0 0.0
        %694 = vmatprep.subr.mxu0 0.0
        %695 = vmatpush2.msra.mxu0 0.0
        %696 = vmatprep.subr.mxu0 0.0
        %697 = vmatpush2.msra.mxu0 0.0
        %698 = vmatprep.mubr.f32.mxu0 0.0
        %699 = vmatmul.mubr.f32.gmra.mxu0 %v632
        %v700 = vpop.f32.mrf.mxu0
        %v701 = vadd.f32 0.0, %v700
        %v702 = vpop.f32.mrf.mxu0
        %703 = vdwg.mxu0
        %vm704 = vcmask 27648
        %705 = vst.msk [vmem:[%s192] sm:$0xf] %vm704, %v482
        %706 = vst.msk [vmem:[%s192 + $0x4] sm:$0xf] %vm704, %v555
        %707 = vst.msk [vmem:[%s192 + $0x8] sm:$0xf] %vm704, %v628
        %708 = vst.msk [vmem:[%s192 + $0xc] sm:$0xf] %vm704, %v701
        %s709 = smul.u32 4, %s17
        %p710 = scmp.lt.s32.totalorder %s709, 7
        %s711 = scalar_select %p710, %s709, 7
        %s712 = smul.addr %s711, 4
        %s713 = scalar_lea.vmem %s3, %s712
        // Predicated region
        $region37: #{tpu_custom_call.1} parent=31 // pred_check
          %p714 = pneg %p103
        $region38: #{tpu_custom_call.1} parent=31 // pred_check_branch
          %716 = sbr.rel (%p714) target = $region40
        $region39: #{tpu_custom_call.1} parent=31 // pred_region
          %s717 = smul.u32 4, %s17
        $region40: #{tpu_custom_call.1} parent=31 // pred_fallthru
          _
      $region32: #{tpu_custom_call.1} parent=5 // pred_fallthru
        _
      %p718 = scmp.le.s32.totalorder 2, %s12
      // Predicated region
      $region41: #{tpu_custom_call.1} parent=5 // pred_check
        %p719 = pneg %p718
      $region42: #{tpu_custom_call.1} parent=5 // pred_check_branch
        %721 = sbr.rel (%p719) target = $region44
      $region43: #{tpu_custom_call.1} parent=5 // pred_region
        %s722 = ssub.s32 %s12, 2
        // Predicated region
        $region45: #{tpu_custom_call.1} parent=43 // pred_check
          %p723 = pneg %p109
        $region46: #{tpu_custom_call.1} parent=43 // pred_check_branch
          %725 = sbr.rel (%p723) target = $region48
        $region47: #{tpu_custom_call.1} parent=43 // pred_region
          %s726 = smul.u32 4, %s18
          %p727 = scmp.lt.s32.totalorder %s726, 7
          %s728 = scalar_select %p727, %s726, 7
          %s729 = smul.addr %s728, 4
          %s730 = scalar_lea.vmem %s3, %s729
        $region48: #{tpu_custom_call.1} parent=43 // pred_fallthru
          _
      $region44: #{tpu_custom_call.1} parent=5 // pred_fallthru
        _
    $region6: #{tpu_custom_call.1} parent=1 // loop_footer
      %s16 = sadd.s32 1, %s12
    $region7: #{tpu_custom_call.1} parent=1 // loop_footer_branch
      %11 = sbr.rel target = $region3
    $region8: #{tpu_custom_call.1} parent=1 // loop_exit
      _
    %731 = vsyncpa [#allocation3], 1
    %s732 = scalar_lea.sflag [#allocation3], 1
    %733 = vsyncpa %s732, 1

</llo_original>
